<compile_context>
chip_gen: v6e
topology: v6e:2x2x1
jax: 0.10.0
libtpu: 0.0.40
codegen_flags: <defaults>
</compile_context>

<pallas_src>
import jax
import jax.numpy as jnp
import numpy as np
from jax import lax
from jax.experimental import pallas as pl
from jax.experimental.pallas import tpu as pltpu


def _round_up(x, m):
    return ((x + m - 1) // m) * m


def _tpu_vmem_capacity_bytes():
    try:
        return int(pltpu.get_tpu_info().vmem_capacity_bytes)
    except Exception:
        return 128 * 1024 * 1024          # v5e / v6e default


def _vmem_budget_bytes():
    # Stay well under physical VMEM so surrounding XLA fusions keep their scoped VMEM:
    # ~48 MiB on 128-MiB chips (v5e/v6e), ~32 MiB on 64-MiB chips (v7x).
    return min(48 * 1024 * 1024, _tpu_vmem_capacity_bytes() // 2)


def _is_small_vmem_chip():
    # 64-MiB-VMEM chips (v7x) have 2 TensorCores -> prefer a few extra parallel tiles.
    return _tpu_vmem_capacity_bytes() <= 96 * 1024 * 1024


# --------------------------------------------------------------------------------------
# Fused conv kernel (stride == 1): per-batch plane resident in VMEM, K*K shifted-window
# matmuls accumulated in f32, bias fused.  out_full[N, OH*Wp]; right-edge columns of each
# row are invalid and sliced off by the caller.
# --------------------------------------------------------------------------------------
def _make_fused_conv_kernel(K, dil, Wp, Lout):
    def kernel(w_ref, x_ref, b_ref, o_ref):
        acc = None
        for kh in range(K):
            for kw in range(K):
                off = kh * dil * Wp + kw * dil
                w_kk = w_ref[kh * K + kw]                       # (N, C) bf16
                x_win = x_ref[0, :, off:off + Lout]             # (C, Lout) bf16, lane-offset load
                part = jnp.dot(w_kk, x_win, preferred_element_type=jnp.float32)
                acc = part if acc is None else acc + part
        o_ref[0] = (acc + b_ref[...]).astype(o_ref.dtype)       # bias broadcast on lanes
    return kernel


def pallas_fused_conv(x_flat_pad, w_kknc, bias_col, *, K, dil, Wp, Lout):
    """x_flat_pad: (B, C, Lpad) bf16, w_kknc: (K*K, N, C) bf16, bias_col: (N, 1) f32.
    Returns (B, N, Lout) f32 with Lout = OH*Wp."""
    B, C, Lpad = x_flat_pad.shape
    KK, N, _ = w_kknc.shape

    need = (2 * C * Lpad * 2 + 2 * KK * N * C * 2 + 3 * N * Lout * 4 + 4 * C * Lout * 2)
    vmem_limit = int(min(max(2 * need, 16 * 1024 * 1024), _vmem_budget_bytes()))

    return pl.pallas_call(
        _make_fused_conv_kernel(K, dil, Wp, Lout),
        out_shape=jax.ShapeDtypeStruct((B, N, Lout), jnp.float32),
        grid_spec=pltpu.PrefetchScalarGridSpec(
            num_scalar_prefetch=0,
            grid=(B,),                                           # one input plane per step
            in_specs=[
                pl.BlockSpec((KK, N, C), lambda b: (0, 0, 0)),   # tiny INR weights, resident
                pl.BlockSpec((1, C, Lpad), lambda b: (b, 0, 0)), # plane b (double-buffered)
                pl.BlockSpec((N, 1), lambda b: (0, 0)),          # bias column
            ],
            out_specs=pl.BlockSpec((1, N, Lout), lambda b: (b, 0, 0)),
        ),
        compiler_params=pltpu.CompilerParams(
            dimension_semantics=("parallel",),
            vmem_limit_bytes=vmem_limit,
        ),
        cost_estimate=pl.CostEstimate(
            flops=2 * B * N * C * KK * Lout,
            transcendentals=0,
            bytes_accessed=int(x_flat_pad.size * 2 + w_kknc.size * 2
                               + bias_col.size * 4 + B * N * Lout * 4),
        ),
    )(w_kknc, x_flat_pad, bias_col)


# --------------------------------------------------------------------------------------
# Fallback: batched im2col GEMM  out[b, N, M] = W[N, Kd] @ A[b, Kd, M] + bias[N, 1]
# --------------------------------------------------------------------------------------
def _gemm_bias_direct_kernel(w_ref, a_ref, b_ref, o_ref):
    # nk == 1: whole contraction resident -> no accumulator, no zero-init.
    o_ref[0] = (jnp.dot(w_ref[...], a_ref[0], preferred_element_type=jnp.float32)
                + b_ref[...]).astype(o_ref.dtype)


def _gemm_bias_acc_kernel(w_ref, a_ref, b_ref, o_ref, acc_ref):
    k = pl.program_id(2)

    @pl.when(k == 0)
    def _init():
        # init accumulator with the broadcast bias -> no epilogue add
        acc_ref[...] = jnp.broadcast_to(b_ref[...], acc_ref.shape).astype(jnp.float32)

    acc_ref[...] += jnp.dot(w_ref[...], a_ref[0], preferred_element_type=jnp.float32)

    @pl.when(k == pl.num_programs(2) - 1)
    def _fin():
        o_ref[0] = acc_ref[...].astype(o_ref.dtype)


def pallas_convgemm_bias(w_mat, patches, bias_col):
    """w_mat: (N, Kd), patches: (B, Kd, M) bf16, bias_col: (N, 1) -> (B, N, M) f32."""
    N, Kd = w_mat.shape
    B, Kd2, M = patches.shape
    assert Kd == Kd2

    # Lane (M) tile: biggest lane-dense tile.  Only trade tile size for extra parallel
    # grid steps on 2-TensorCore (small-VMEM) chips; single-TC v5e/v6e keep the largest.
    tm = min(512, _round_up(M, 128))
    if _is_small_vmem_chip():
        while tm > 128 and B * pl.cdiv(M, tm) < 4:
            tm = max(128, _round_up(tm // 2, 128))
    nm = pl.cdiv(M, tm)

    # Contraction (Kd): resident when small; otherwise zero-pad Kd to a multiple of tk
    # (zero rows contribute nothing to the dot) so the A tile stays bounded.
    if Kd <= 2048:
        tk, nk = Kd, 1
    else:
        tk = 512
        kd_pad = _round_up(Kd, tk)
        nk = kd_pad // tk
        if kd_pad != Kd:
            w_mat = jnp.pad(w_mat, ((0, 0), (0, kd_pad - Kd)))
            patches = jnp.pad(patches, ((0, 0), (0, kd_pad - Kd), (0, 0)))
        Kd = kd_pad

    w_bf = w_mat.astype(jnp.bfloat16)
    a_bf = patches.astype(jnp.bfloat16)
    b_f32 = bias_col.astype(jnp.float32)

    need = (2 * tk * tm * 2) + (2 * N * tk * 2) + (2 * N * 4) + (2 * N * tm * 4) + (N * tm * 4)
    vmem_limit = int(min(max(2 * need, 16 * 1024 * 1024), _vmem_budget_bytes()))

    cost = pl.CostEstimate(
        flops=2 * B * N * Kd * M,
        transcendentals=0,
        bytes_accessed=int(a_bf.size * 2 + w_bf.size * 2 + B * N * M * 4))

    # TODO(synk): if an xprof trace still shows exposed A-tile DMA after these tiling
    # fixes, add pipeline_mode=pl.Buffered(3) on the patch BlockSpec (one extra tk*tm*2 B).

    if nk == 1:
        return pl.pallas_call(
            _gemm_bias_direct_kernel,
            out_shape=jax.ShapeDtypeStruct((B, N, M), jnp.float32),
            grid_spec=pltpu.PrefetchScalarGridSpec(
                num_scalar_prefetch=0,
                grid=(B, nm),
                in_specs=[
                    pl.BlockSpec((N, Kd), lambda b, m: (0, 0)),       # weight resident
                    pl.BlockSpec((1, Kd, tm), lambda b, m: (b, 0, m)),
                    pl.BlockSpec((N, 1), lambda b, m: (0, 0)),
                ],
                out_specs=pl.BlockSpec((1, N, tm), lambda b, m: (b, 0, m)),
            ),
            compiler_params=pltpu.CompilerParams(
                dimension_semantics=("parallel", "parallel"),
                vmem_limit_bytes=vmem_limit,
            ),
            cost_estimate=cost,
        )(w_bf, a_bf, b_f32)

    return pl.pallas_call(
        _gemm_bias_acc_kernel,
        out_shape=jax.ShapeDtypeStruct((B, N, M), jnp.float32),
        grid_spec=pltpu.PrefetchScalarGridSpec(
            num_scalar_prefetch=0,
            grid=(B, nm, nk),                                        # reduction axis last
            in_specs=[
                pl.BlockSpec((N, tk), lambda b, m, k: (0, k)),
                pl.BlockSpec((1, tk, tm), lambda b, m, k: (b, k, m)),
                pl.BlockSpec((N, 1), lambda b, m, k: (0, 0)),
            ],
            out_specs=pl.BlockSpec((1, N, tm), lambda b, m, k: (b, 0, m)),
            scratch_shapes=[pltpu.VMEM((N, tm), jnp.float32)],
        ),
        compiler_params=pltpu.CompilerParams(
            dimension_semantics=("parallel", "parallel", "arbitrary"),
            vmem_limit_bytes=vmem_limit,
        ),
        cost_estimate=cost,
    )(w_bf, a_bf, b_f32)


# --------------------------------------------------------------------------------------
# Module glue: grid / group / SIREN INR / mask (tiny kernel-generation path, plain JAX)
# --------------------------------------------------------------------------------------
def get_grid2d_affine(kernel_size):
    """Matches get_grid2d(kernel_size, 'affine'): F.affine_grid(eye, align_corners=False)
    then rearrange 'h w r2 -> r2 w h'.  Returns (2, w, h)."""
    if kernel_size == 1:
        return jnp.zeros((2, 1, 1), jnp.float32)
    lin = (jnp.arange(kernel_size, dtype=jnp.float32) + 0.5) / kernel_size * 2.0 - 1.0
    g0 = jnp.broadcast_to(lin[:, None], (kernel_size, kernel_size))
    g1 = jnp.broadcast_to(lin[None, :], (kernel_size, kernel_size))
    return jnp.stack([g0, g1], axis=0)


def siren_init(key, in_f, hidden, num_hidden, out_f, w0=30.0):
    keys = jax.random.split(key, num_hidden + 2)
    params = []
    w = jax.random.uniform(keys[0], (in_f, hidden), jnp.float32, -1.0 / in_f, 1.0 / in_f)
    params.append((w, jnp.zeros((hidden,), jnp.float32)))
    lim = float(np.sqrt(6.0 / hidden) / w0)
    for i in range(num_hidden):
        w = jax.random.uniform(keys[i + 1], (hidden, hidden), jnp.float32, -lim, lim)
        params.append((w, jnp.zeros((hidden,), jnp.float32)))
    w = jax.random.uniform(keys[-1], (hidden, out_f), jnp.float32, -lim, lim)
    params.append((w, jnp.zeros((out_f,), jnp.float32)))
    return params


def siren_apply(params, x, w0=30.0):
    h = x
    for w, b in params[:-1]:
        h = jnp.sin(w0 * (h @ w + b))
    w, b = params[-1]
    return h @ w + b


def forward_kernel(siren_params, g_tilde, g_inv, grid2d, *, kernel_size, in_ch, out_ch):
    """Replicates GConv2d.forward_kernel for the SO(2) group (volume preserving)."""
    G_in, G_out, K = g_tilde.shape[0], g_inv.shape[0], kernel_size

    # group.outer_act_group: pairwise g_inv[o] @ g_tilde[i]   -> (G_out, G_in, 2, 2)
    h = jnp.einsum("oab,ibc->oiac", g_inv, g_tilde)
    # group.left_xi_inv for SO(2): rotation angle (group.dim == 1)
    theta = jnp.arctan2(h[..., 1, 0], h[..., 0, 0])                      # (G_out, G_in)
    h_grid = jnp.broadcast_to(theta[:, :, None, None, None], (G_out, G_in, 1, K, K))

    # group.outer_act_r2: g_inv acting on the R^2 grid                   -> (G_out, 2, w, h)
    r2 = jnp.einsum("oab,bwh->oawh", g_inv, grid2d)
    r2_grid = jnp.broadcast_to(r2[:, None], (G_out, G_in, 2, K, K))

    r2h = jnp.concatenate([r2_grid, h_grid], axis=2)                     # (og, ig, 3, w, h)

    # coords: rearrange 'out_gr in_gr dim w h -> (out_gr in_gr h w) dim'
    coords = jnp.transpose(r2h, (0, 1, 4, 3, 2)).reshape(G_out * G_in * K * K, 3)
    feats = siren_apply(siren_params, coords)                            # (N, out_ch*in_ch)

    # rearrange '(og ig h w) (oc ic) -> oc og ic ig h w'
    kernel6 = feats.reshape(G_out, G_in, K, K, out_ch, in_ch)
    kernel6 = jnp.transpose(kernel6, (4, 0, 5, 1, 2, 3))

    # circular_mask (hard, volume-preserving group): zero where |(x, y)| > 1
    mask_grids = jnp.transpose(r2h, (0, 2, 1, 4, 3))                     # (og, dim, ig, h, w)
    radius = jnp.sqrt(jnp.sum(mask_grids[:, :2] ** 2, axis=1))           # (og, ig, h, w)
    drop = (radius > 1.0)[None, :, None, :, :, :]
    kernel6 = jnp.where(drop, 0.0, kernel6)
    return kernel6                                                        # (oc, og, ic, ig, h, w)


# --------------------------------------------------------------------------------------
# Full GConv2d forward
# --------------------------------------------------------------------------------------
def gconv2d_forward(x, siren_params, bias, g_tilde, g_inv, grid2d, *,
                    in_channels, out_channels, kernel_size,
                    stride=1, padding=0, dilation=1):
    # TODO(synk): groups != 1 not implemented (module default groups=1).
    B, Cch, G, H, W = x.shape
    K = kernel_size
    assert Cch == in_channels

    kernel6 = forward_kernel(siren_params, g_tilde, g_inv, grid2d,
                             kernel_size=K, in_ch=in_channels, out_ch=out_channels)
    # rearrange 'oc og ic ig h w -> (oc og) (ic ig) h w'
    N = out_channels * G
    C = in_channels * G
    w_conv = kernel6.reshape(N, C, K, K)

    # pack_regular + spatial pad; cast to bf16 BEFORE any expansion so every activation
    # byte that moves through HBM from here on is 2 bytes/elem.
    x_packed = x.reshape(B, C, H, W).astype(jnp.bfloat16)
    xp = jnp.pad(x_packed, ((0, 0), (0, 0), (padding, padding), (padding, padding))) \
        if padding > 0 else x_packed
    Hp, Wp = xp.shape[2], xp.shape[3]
    OH = (Hp - dilation * (K - 1) - 1) // stride + 1
    OW = (Wp - dilation * (K - 1) - 1) // stride + 1

    bias_col = jnp.repeat(bias, G)[:, None].astype(jnp.float32)          # (N, 1), n = oc*G+og

    Lout = OH * Wp
    Lpad = _round_up(Hp * Wp + dilation * (K - 1), 128)
    fused_need = (2 * C * Lpad * 2 + 2 * K * K * N * C * 2
                  + 3 * N * Lout * 4 + 4 * C * Lout * 2)
    use_fused = (stride == 1) and (2 * fused_need <= _vmem_budget_bytes())
    # TODO(synk): tile the fused path over output-row blocks instead of falling back when
    # a single plane does not fit the VMEM budget.

    if use_fused:
        # Fully fused im2col: each input plane is read from HBM exactly once; the K*K
        # shifted windows are constant lane-offset loads of the row-flattened plane.
        x_flat = xp.reshape(B, C, Hp * Wp)
        x_flat = jnp.pad(x_flat, ((0, 0), (0, 0), (0, Lpad - Hp * Wp)))
        w_kknc = jnp.transpose(w_conv, (2, 3, 0, 1)).reshape(K * K, N, C).astype(jnp.bfloat16)
        out_full = pallas_fused_conv(x_flat, w_kknc, bias_col,
                                     K=K, dil=dilation, Wp=Wp, Lout=Lout)   # (B, N, OH*Wp)
        out = out_full.reshape(B, out_channels, G, OH, Wp)[:, :, :, :, :OW]
    else:
        # Batched im2col GEMM fallback (stride > 1 or oversized plane).  Patches are built
        # batch-major as (B, Kd, OH*OW) with a pure reshape (no transpose), in bf16.
        cols = []
        for kh in range(K):
            for kw in range(K):
                sl = xp[:, :,
                        kh * dilation: kh * dilation + (OH - 1) * stride + 1: stride,
                        kw * dilation: kw * dilation + (OW - 1) * stride + 1: stride]
                cols.append(sl)                                  # (B, C, OH, OW)
        col = jnp.stack(cols, axis=2)                            # (B, C, K*K, OH, OW)
        patches = col.reshape(B, C * K * K, OH * OW)             # (B, Kd, M)
        w_mat = w_conv.reshape(N, C * K * K)                     # (N, Kd), no transpose
        out_bnm = pallas_convgemm_bias(w_mat, patches, bias_col)  # (B, N, M)
        out = out_bnm.reshape(B, out_channels, G, OH, OW)        # pure reshape un-pack

    return out, w_conv


def reference_forward(x, w_conv, bias, *, stride=1, padding=0, dilation=1):
    """Pure-JAX reference (lax conv) for correctness checking.
    Operands are rounded to bf16 (as in the Pallas MXU path) and accumulated in f32."""
    B, Cch, G, H, W = x.shape
    x_packed = x.reshape(B, Cch * G, H, W).astype(jnp.bfloat16).astype(jnp.float32)
    w = w_conv.astype(jnp.bfloat16).astype(jnp.float32)
    y = lax.conv_general_dilated(
        x_packed, w, window_strides=(stride, stride),
        padding=[(padding, padding), (padding, padding)],
        rhs_dilation=(dilation, dilation),
        dimension_numbers=("NCHW", "OIHW", "NCHW"))
    out_ch = bias.shape[0]
    y = y.reshape(B, out_ch, G, y.shape[2], y.shape[3])
    return y + bias.reshape(1, -1, 1, 1, 1)


# --------------------------------------------------------------------------------------
if __name__ == "__main__":
    # module config (small): SO(2) group, 2 group samples, 4->4 channels, 3x3 kernel
    num_gsamples = 2
    in_channels = 4
    out_channels = 4
    kernel_size = 3
    hidden, num_hidden = 64, 2            # default INRPartConfig(SIREN, 64, num_hidden=2)
    group_dim = 1                         # SO(2)

    key = jax.random.PRNGKey(0)
    k_x, k_siren, k_bias = jax.random.split(key, 3)

    # deterministic parameters
    siren_params = siren_init(k_siren, in_f=group_dim + 2, hidden=hidden,
                              num_hidden=num_hidden, out_f=out_channels * in_channels)
    bias = jax.random.normal(k_bias, (out_channels,), jnp.float32) * 0.1

    # buffers from __init__/register_gsamples: identity group samples + affine grid
    eye = jnp.eye(2, dtype=jnp.float32)
    g_tilde = jnp.broadcast_to(eye, (num_gsamples, 2, 2))
    g_inv = jnp.broadcast_to(eye, (num_gsamples, 2, 2))
    grid2d = get_grid2d_affine(kernel_size)

    # input: (batch, ch, gsamples, H, W)
    x = jax.random.normal(k_x, (2, in_channels, num_gsamples, 16, 16), jnp.float32)

    fwd = jax.jit(gconv2d_forward,
                  static_argnames=("in_channels", "out_channels", "kernel_size",
                                   "stride", "padding", "dilation"))

    # ---- Case 1: stride=1  -> fused conv path (no HBM im2col expansion) ----
    out1, w_conv1 = fwd(x, siren_params, bias, g_tilde, g_inv, grid2d,
                        in_channels=in_channels, out_channels=out_channels,
                        kernel_size=kernel_size, stride=1, padding=0, dilation=1)
    out1 = jax.block_until_ready(out1)
    ref1 = jax.block_until_ready(
        reference_forward(x, w_conv1, bias, stride=1, padding=0, dilation=1))
    assert out1.shape == (2, out_channels, num_gsamples, 14, 14), out1.shape
    assert np.allclose(np.asarray(out1), np.asarray(ref1), rtol=5e-3, atol=5e-3), (
        float(np.max(np.abs(np.asarray(out1) - np.asarray(ref1)))))

    # ---- Case 2: stride=2, padding=1  -> batched im2col-GEMM Pallas path ----
    out2, w_conv2 = fwd(x, siren_params, bias, g_tilde, g_inv, grid2d,
                        in_channels=in_channels, out_channels=out_channels,
                        kernel_size=kernel_size, stride=2, padding=1, dilation=1)
    out2 = jax.block_until_ready(out2)
    ref2 = jax.block_until_ready(
        reference_forward(x, w_conv2, bias, stride=2, padding=1, dilation=1))
    assert out2.shape == (2, out_channels, num_gsamples, 8, 8), out2.shape
    assert np.allclose(np.asarray(out2), np.asarray(ref2), rtol=5e-3, atol=5e-3), (
        float(np.max(np.abs(np.asarray(out2) - np.asarray(ref2)))))

    print("KERNEL_OK")
</pallas_src>

<mosaic_0001>
module attributes {stable_mosaic.version = 11 : i64} {
  func.func @kernel(%arg0: i32, %arg1: memref<9x8x8xbf16, #tpu.memory_space<vmem>>, %arg2: memref<1x8x384xbf16, #tpu.memory_space<vmem>>, %arg3: memref<8x1xf32, #tpu.memory_space<vmem>>, %arg4: memref<1x8x224xf32, #tpu.memory_space<vmem>>) attributes {dimension_semantics = [#tpu.dimension_semantics<parallel>], iteration_bounds = array<i64: 2>, scalar_prefetch = 0 : i64, scratch_operands = 0 : i64, tpu.core_type = #tpu.core_type<tc>, window_params = [{pipeline_mode = #tpu.pipeline_mode<synchronous>, transform_indices = @transform_0, window_bounds = array<i64: 9, 8, 8>}, {transform_indices = @transform_1, window_bounds = array<i64: 1, 8, 384>}, {pipeline_mode = #tpu.pipeline_mode<synchronous>, transform_indices = @transform_2, window_bounds = array<i64: 8, 1>}, {transform_indices = @transform_3, window_bounds = array<i64: 1, 8, 224>}]} {
    %c0 = arith.constant 0 : index
    %c0_0 = arith.constant 0 : index
    %c0_1 = arith.constant 0 : index
    %0 = vector.load %arg1[%c0, %c0_0, %c0_1] : memref<9x8x8xbf16, #tpu.memory_space<vmem>>, vector<1x8x8xbf16>
    %1 = vector.shape_cast %0 : vector<1x8x8xbf16> to vector<8x8xbf16>
    %c0_2 = arith.constant 0 : index
    %c0_3 = arith.constant 0 : index
    %c0_4 = arith.constant 0 : index
    %2 = vector.load %arg2[%c0_2, %c0_3, %c0_4] : memref<1x8x384xbf16, #tpu.memory_space<vmem>>, vector<1x8x224xbf16>
    %3 = vector.shape_cast %2 : vector<1x8x224xbf16> to vector<8x224xbf16>
    %cst = arith.constant dense<0.000000e+00> : vector<8x224xf32>
    %4 = tpu.matmul %1, %3, %cst {dimension_numbers = #tpu.dot_dimension_numbers<[1], [0], [0], [1], [0, 0, 1, 1], [], []>} : vector<8x8xbf16>, vector<8x224xbf16>, vector<8x224xf32> -> vector<8x224xf32>
    %c1 = arith.constant 1 : index
    %c0_5 = arith.constant 0 : index
    %c0_6 = arith.constant 0 : index
    %5 = vector.load %arg1[%c1, %c0_5, %c0_6] : memref<9x8x8xbf16, #tpu.memory_space<vmem>>, vector<1x8x8xbf16>
    %6 = vector.shape_cast %5 : vector<1x8x8xbf16> to vector<8x8xbf16>
    %c0_7 = arith.constant 0 : index
    %c0_8 = arith.constant 0 : index
    %c1_9 = arith.constant 1 : index
    %7 = vector.load %arg2[%c0_7, %c0_8, %c1_9] : memref<1x8x384xbf16, #tpu.memory_space<vmem>>, vector<1x8x224xbf16>
    %8 = vector.shape_cast %7 : vector<1x8x224xbf16> to vector<8x224xbf16>
    %cst_10 = arith.constant dense<0.000000e+00> : vector<8x224xf32>
    %9 = tpu.matmul %6, %8, %cst_10 {dimension_numbers = #tpu.dot_dimension_numbers<[1], [0], [0], [1], [0, 0, 1, 1], [], []>} : vector<8x8xbf16>, vector<8x224xbf16>, vector<8x224xf32> -> vector<8x224xf32>
    %10 = arith.addf %4, %9 : vector<8x224xf32>
    %c2 = arith.constant 2 : index
    %c0_11 = arith.constant 0 : index
    %c0_12 = arith.constant 0 : index
    %11 = vector.load %arg1[%c2, %c0_11, %c0_12] : memref<9x8x8xbf16, #tpu.memory_space<vmem>>, vector<1x8x8xbf16>
    %12 = vector.shape_cast %11 : vector<1x8x8xbf16> to vector<8x8xbf16>
    %c0_13 = arith.constant 0 : index
    %c0_14 = arith.constant 0 : index
    %c2_15 = arith.constant 2 : index
    %13 = vector.load %arg2[%c0_13, %c0_14, %c2_15] : memref<1x8x384xbf16, #tpu.memory_space<vmem>>, vector<1x8x224xbf16>
    %14 = vector.shape_cast %13 : vector<1x8x224xbf16> to vector<8x224xbf16>
    %cst_16 = arith.constant dense<0.000000e+00> : vector<8x224xf32>
    %15 = tpu.matmul %12, %14, %cst_16 {dimension_numbers = #tpu.dot_dimension_numbers<[1], [0], [0], [1], [0, 0, 1, 1], [], []>} : vector<8x8xbf16>, vector<8x224xbf16>, vector<8x224xf32> -> vector<8x224xf32>
    %16 = arith.addf %10, %15 : vector<8x224xf32>
    %c3 = arith.constant 3 : index
    %c0_17 = arith.constant 0 : index
    %c0_18 = arith.constant 0 : index
    %17 = vector.load %arg1[%c3, %c0_17, %c0_18] : memref<9x8x8xbf16, #tpu.memory_space<vmem>>, vector<1x8x8xbf16>
    %18 = vector.shape_cast %17 : vector<1x8x8xbf16> to vector<8x8xbf16>
    %c0_19 = arith.constant 0 : index
    %c0_20 = arith.constant 0 : index
    %c16 = arith.constant 16 : index
    %19 = vector.load %arg2[%c0_19, %c0_20, %c16] : memref<1x8x384xbf16, #tpu.memory_space<vmem>>, vector<1x8x224xbf16>
    %20 = vector.shape_cast %19 : vector<1x8x224xbf16> to vector<8x224xbf16>
    %cst_21 = arith.constant dense<0.000000e+00> : vector<8x224xf32>
    %21 = tpu.matmul %18, %20, %cst_21 {dimension_numbers = #tpu.dot_dimension_numbers<[1], [0], [0], [1], [0, 0, 1, 1], [], []>} : vector<8x8xbf16>, vector<8x224xbf16>, vector<8x224xf32> -> vector<8x224xf32>
    %22 = arith.addf %16, %21 : vector<8x224xf32>
    %c4 = arith.constant 4 : index
    %c0_22 = arith.constant 0 : index
    %c0_23 = arith.constant 0 : index
    %23 = vector.load %arg1[%c4, %c0_22, %c0_23] : memref<9x8x8xbf16, #tpu.memory_space<vmem>>, vector<1x8x8xbf16>
    %24 = vector.shape_cast %23 : vector<1x8x8xbf16> to vector<8x8xbf16>
    %c0_24 = arith.constant 0 : index
    %c0_25 = arith.constant 0 : index
    %c17 = arith.constant 17 : index
    %25 = vector.load %arg2[%c0_24, %c0_25, %c17] : memref<1x8x384xbf16, #tpu.memory_space<vmem>>, vector<1x8x224xbf16>
    %26 = vector.shape_cast %25 : vector<1x8x224xbf16> to vector<8x224xbf16>
    %cst_26 = arith.constant dense<0.000000e+00> : vector<8x224xf32>
    %27 = tpu.matmul %24, %26, %cst_26 {dimension_numbers = #tpu.dot_dimension_numbers<[1], [0], [0], [1], [0, 0, 1, 1], [], []>} : vector<8x8xbf16>, vector<8x224xbf16>, vector<8x224xf32> -> vector<8x224xf32>
    %28 = arith.addf %22, %27 : vector<8x224xf32>
    %c5 = arith.constant 5 : index
    %c0_27 = arith.constant 0 : index
    %c0_28 = arith.constant 0 : index
    %29 = vector.load %arg1[%c5, %c0_27, %c0_28] : memref<9x8x8xbf16, #tpu.memory_space<vmem>>, vector<1x8x8xbf16>
    %30 = vector.shape_cast %29 : vector<1x8x8xbf16> to vector<8x8xbf16>
    %c0_29 = arith.constant 0 : index
    %c0_30 = arith.constant 0 : index
    %c18 = arith.constant 18 : index
    %31 = vector.load %arg2[%c0_29, %c0_30, %c18] : memref<1x8x384xbf16, #tpu.memory_space<vmem>>, vector<1x8x224xbf16>
    %32 = vector.shape_cast %31 : vector<1x8x224xbf16> to vector<8x224xbf16>
    %cst_31 = arith.constant dense<0.000000e+00> : vector<8x224xf32>
    %33 = tpu.matmul %30, %32, %cst_31 {dimension_numbers = #tpu.dot_dimension_numbers<[1], [0], [0], [1], [0, 0, 1, 1], [], []>} : vector<8x8xbf16>, vector<8x224xbf16>, vector<8x224xf32> -> vector<8x224xf32>
    %34 = arith.addf %28, %33 : vector<8x224xf32>
    %c6 = arith.constant 6 : index
    %c0_32 = arith.constant 0 : index
    %c0_33 = arith.constant 0 : index
    %35 = vector.load %arg1[%c6, %c0_32, %c0_33] : memref<9x8x8xbf16, #tpu.memory_space<vmem>>, vector<1x8x8xbf16>
    %36 = vector.shape_cast %35 : vector<1x8x8xbf16> to vector<8x8xbf16>
    %c0_34 = arith.constant 0 : index
    %c0_35 = arith.constant 0 : index
    %c32 = arith.constant 32 : index
    %37 = vector.load %arg2[%c0_34, %c0_35, %c32] : memref<1x8x384xbf16, #tpu.memory_space<vmem>>, vector<1x8x224xbf16>
    %38 = vector.shape_cast %37 : vector<1x8x224xbf16> to vector<8x224xbf16>
    %cst_36 = arith.constant dense<0.000000e+00> : vector<8x224xf32>
    %39 = tpu.matmul %36, %38, %cst_36 {dimension_numbers = #tpu.dot_dimension_numbers<[1], [0], [0], [1], [0, 0, 1, 1], [], []>} : vector<8x8xbf16>, vector<8x224xbf16>, vector<8x224xf32> -> vector<8x224xf32>
    %40 = arith.addf %34, %39 : vector<8x224xf32>
    %c7 = arith.constant 7 : index
    %c0_37 = arith.constant 0 : index
    %c0_38 = arith.constant 0 : index
    %41 = vector.load %arg1[%c7, %c0_37, %c0_38] : memref<9x8x8xbf16, #tpu.memory_space<vmem>>, vector<1x8x8xbf16>
    %42 = vector.shape_cast %41 : vector<1x8x8xbf16> to vector<8x8xbf16>
    %c0_39 = arith.constant 0 : index
    %c0_40 = arith.constant 0 : index
    %c33 = arith.constant 33 : index
    %43 = vector.load %arg2[%c0_39, %c0_40, %c33] : memref<1x8x384xbf16, #tpu.memory_space<vmem>>, vector<1x8x224xbf16>
    %44 = vector.shape_cast %43 : vector<1x8x224xbf16> to vector<8x224xbf16>
    %cst_41 = arith.constant dense<0.000000e+00> : vector<8x224xf32>
    %45 = tpu.matmul %42, %44, %cst_41 {dimension_numbers = #tpu.dot_dimension_numbers<[1], [0], [0], [1], [0, 0, 1, 1], [], []>} : vector<8x8xbf16>, vector<8x224xbf16>, vector<8x224xf32> -> vector<8x224xf32>
    %46 = arith.addf %40, %45 : vector<8x224xf32>
    %c8 = arith.constant 8 : index
    %c0_42 = arith.constant 0 : index
    %c0_43 = arith.constant 0 : index
    %47 = vector.load %arg1[%c8, %c0_42, %c0_43] : memref<9x8x8xbf16, #tpu.memory_space<vmem>>, vector<1x8x8xbf16>
    %48 = vector.shape_cast %47 : vector<1x8x8xbf16> to vector<8x8xbf16>
    %c0_44 = arith.constant 0 : index
    %c0_45 = arith.constant 0 : index
    %c34 = arith.constant 34 : index
    %49 = vector.load %arg2[%c0_44, %c0_45, %c34] : memref<1x8x384xbf16, #tpu.memory_space<vmem>>, vector<1x8x224xbf16>
    %50 = vector.shape_cast %49 : vector<1x8x224xbf16> to vector<8x224xbf16>
    %cst_46 = arith.constant dense<0.000000e+00> : vector<8x224xf32>
    %51 = tpu.matmul %48, %50, %cst_46 {dimension_numbers = #tpu.dot_dimension_numbers<[1], [0], [0], [1], [0, 0, 1, 1], [], []>} : vector<8x8xbf16>, vector<8x224xbf16>, vector<8x224xf32> -> vector<8x224xf32>
    %52 = arith.addf %46, %51 : vector<8x224xf32>
    %c0_47 = arith.constant 0 : index
    %c0_48 = arith.constant 0 : index
    %53 = vector.load %arg3[%c0_47, %c0_48] : memref<8x1xf32, #tpu.memory_space<vmem>>, vector<8x1xf32>
    %54 = vector.broadcast %53 : vector<8x1xf32> to vector<8x224xf32>
    %55 = arith.addf %52, %54 : vector<8x224xf32>
    %c0_49 = arith.constant 0 : index
    %c0_50 = arith.constant 0 : index
    %c0_51 = arith.constant 0 : index
    %56 = vector.load %arg4[%c0_49, %c0_50, %c0_51] : memref<1x8x224xf32, #tpu.memory_space<vmem>>, vector<1x8x224xf32>
    %57 = vector.shape_cast %56 : vector<1x8x224xf32> to vector<8x224xf32>
    %58 = vector.shape_cast %55 : vector<8x224xf32> to vector<1x8x224xf32>
    tpu.vector_store %arg4[%c0_49, %c0_50, %c0_51], %58 {strides = array<i32>} : memref<1x8x224xf32, #tpu.memory_space<vmem>>, vector<1x8x224xf32>,
    return
  }
  func.func @transform_0(%arg0: i32) -> (i32, i32, i32) {
    %c0_i32 = arith.constant 0 : i32
    %c0_i32_0 = arith.constant 0 : i32
    %c0_i32_1 = arith.constant 0 : i32
    %c0_i32_2 = arith.constant 0 : i32
    return %c0_i32, %c0_i32_0, %c0_i32_1 : i32, i32, i32
  }
  func.func @transform_1(%arg0: i32) -> (i32, i32, i32) {
    %c0_i32 = arith.constant 0 : i32
    %c0_i32_0 = arith.constant 0 : i32
    %c0_i32_1 = arith.constant 0 : i32
    return %arg0, %c0_i32, %c0_i32_0 : i32, i32, i32
  }
  func.func @transform_2(%arg0: i32) -> (i32, i32) {
    %c0_i32 = arith.constant 0 : i32
    %c0_i32_0 = arith.constant 0 : i32
    %c0_i32_1 = arith.constant 0 : i32
    return %c0_i32, %c0_i32_0 : i32, i32
  }
  func.func @transform_3(%arg0: i32) -> (i32, i32, i32) {
    %c0_i32 = arith.constant 0 : i32
    %c0_i32_0 = arith.constant 0 : i32
    %c0_i32_1 = arith.constant 0 : i32
    return %arg0, %c0_i32, %c0_i32_0 : i32, i32, i32
  }
}

</mosaic_0001>

<llo_original>
// kernel: gconv2d_forward.1
$region0: #{gconv2d_forward.1}
  #allocation0 [shape = 'u32[]', space=smem, size = 0x4, offset = 0x4, fixed_abs, tag = 'smem constant byte address 0x4 - core index']
  #allocation1 [shape = 'u32[144,128]{1,0:T(1,128)}', space=vmem, size = 0x12000, scoped, tag = 'internal scratch']
  %s0 = inlined_call_operand.vmem [shape: bf16[9,8,8], index: 0, kind: input, shape index: {}]
  %s1 = inlined_call_operand.vmem [shape: bf16[2,8,384], index: 1, kind: input, shape index: {}]
  %s2 = inlined_call_operand.vmem [shape: f32[8,1], index: 2, kind: input, shape index: {}]
  %s3 = inlined_call_operand.vmem [shape: f32[2,8,224], index: 3, kind: output, shape index: {}]
  %s4 = sld [smem:[#allocation0]]
  $region45: #{gconv2d_forward.1} parent=0
    _
  %s6 = ssub.s32 1, %s4
  %s7 = scalar_select 0, %s6, %s4
  loop: start=0, step=1, limit=4
  $region2: #{gconv2d_forward.1} parent=0 // loop_pre_header
    _
  $region3: #{gconv2d_forward.1} parent=0 // loop_header
    %s9 = sphi 0, %s13
    %p10 = scmp.ge.s32.totalorder %s9, 4
    %s17 = sphi 0, %s17
    %s19 = sphi 0, %s17
    %s20 = sphi 0, %s19
    %s34 = sphi 0, %s20
    %s40 = sphi 0, %s42
    %s43 = sphi 0, %s40
    %s44 = sphi 0, %s43
    %s60 = sphi 0, %s44
    %s64 = sphi 0, %s64
    %s66 = sphi 0, %s64
    %s67 = sphi 0, %s66
    %s81 = sphi 0, %s67
    %s87 = sphi 0, %s89
    %s90 = sphi 0, %s87
    %s91 = sphi 0, %s90
    %s107 = sphi 0, %s91
  $region4: #{gconv2d_forward.1} parent=0 // loop_header_branch
    %12 = sbr.rel (%p10) target = $region8
  $region5: #{gconv2d_forward.1} parent=0 // loop_body
    %s14 = ssub.s32 %s9, 1
    %s15 = ssub.s32 %s9, 2
    %s16 = sadd.s32 %s9, 1
    %s18 = sadd.s32 %s17, 1
    %p21 = scmp.eq.s32.totalorder %s9, 1
    %p22 = scmp.ne.s32.totalorder %s17, %s19
    %p23 = scmp.eq.s32.totalorder %s9, 0
    %p24 = por %p22, %p23
    %p25 = scmp.ne.s32.totalorder %s17, %s19
    %p26 = scmp.eq.s32.totalorder %s14, 1
    %p27 = por %p25, %p26
    %p28 = scmp.ne.s32.totalorder %s19, %s20
    %p29 = scmp.eq.s32.totalorder %s14, 0
    %p30 = por %p28, %p29
    %p31 = scmp.ne.s32.totalorder %s19, %s20
    %p32 = scmp.eq.s32.totalorder %s15, 1
    %p33 = por %p31, %p32
    %p35 = scmp.ne.s32.totalorder %s20, %s34
    %p36 = scmp.eq.s32.totalorder %s15, 0
    %p37 = por %p35, %p36
    %s38 = ssub.s32 %s9, %s16
    %p39 = scmp.eq.s32.totalorder %s38, 0
    %s41 = sadd.s32 %s40, 1
    %s42 = scalar_select %p39, %s40, %s41
    %p45 = pneg %p39
    %p46 = scmp.eq.s32.totalorder %s9, 1
    %p47 = por %p45, %p46
    %p48 = scmp.ne.s32.totalorder %s40, %s43
    %p49 = scmp.eq.s32.totalorder %s9, 0
    %p50 = por %p48, %p49
    %p51 = scmp.ne.s32.totalorder %s40, %s43
    %p52 = scmp.eq.s32.totalorder %s14, 1
    %p53 = por %p51, %p52
    %p54 = scmp.ne.s32.totalorder %s43, %s44
    %p55 = scmp.eq.s32.totalorder %s14, 0
    %p56 = por %p54, %p55
    %p57 = scmp.ne.s32.totalorder %s43, %s44
    %p58 = scmp.eq.s32.totalorder %s15, 1
    %p59 = por %p57, %p58
    %p61 = scmp.ne.s32.totalorder %s44, %s60
    %p62 = scmp.eq.s32.totalorder %s15, 0
    %p63 = por %p61, %p62
    %s65 = sadd.s32 %s64, 1
    %p68 = scmp.eq.s32.totalorder %s9, 1
    %p69 = scmp.ne.s32.totalorder %s64, %s66
    %p70 = scmp.eq.s32.totalorder %s9, 0
    %p71 = por %p69, %p70
    %p72 = scmp.ne.s32.totalorder %s64, %s66
    %p73 = scmp.eq.s32.totalorder %s14, 1
    %p74 = por %p72, %p73
    %p75 = scmp.ne.s32.totalorder %s66, %s67
    %p76 = scmp.eq.s32.totalorder %s14, 0
    %p77 = por %p75, %p76
    %p78 = scmp.ne.s32.totalorder %s66, %s67
    %p79 = scmp.eq.s32.totalorder %s15, 1
    %p80 = por %p78, %p79
    %p82 = scmp.ne.s32.totalorder %s67, %s81
    %p83 = scmp.eq.s32.totalorder %s15, 0
    %p84 = por %p82, %p83
    %s85 = ssub.s32 %s9, %s16
    %p86 = scmp.eq.s32.totalorder %s85, 0
    %s88 = sadd.s32 %s87, 1
    %s89 = scalar_select %p86, %s87, %s88
    %p92 = pneg %p86
    %p93 = scmp.eq.s32.totalorder %s9, 1
    %p94 = por %p92, %p93
    %p95 = scmp.ne.s32.totalorder %s87, %s90
    %p96 = scmp.eq.s32.totalorder %s9, 0
    %p97 = por %p95, %p96
    %p98 = scmp.ne.s32.totalorder %s87, %s90
    %p99 = scmp.eq.s32.totalorder %s14, 1
    %p100 = por %p98, %p99
    %p101 = scmp.ne.s32.totalorder %s90, %s91
    %p102 = scmp.eq.s32.totalorder %s14, 0
    %p103 = por %p101, %p102
    %p104 = scmp.ne.s32.totalorder %s90, %s91
    %p105 = scmp.eq.s32.totalorder %s15, 1
    %p106 = por %p104, %p105
    %p108 = scmp.ne.s32.totalorder %s91, %s107
    %p109 = scmp.eq.s32.totalorder %s15, 0
    %p110 = por %p108, %p109
    %p111 = scmp.le.s32.totalorder 1, %s9
    %p112 = scmp.lt.s32.totalorder %s9, 3
    %p113 = pnand %p111, %p112
    %p114 = pneg %p113
    // Predicated region
    $region9: #{gconv2d_forward.1} parent=5 // pred_check
      _
    $region10: #{gconv2d_forward.1} parent=5 // pred_check_branch
      %116 = sbr.rel (%p113) target = $region12
    $region11: #{gconv2d_forward.1} parent=5 // pred_region
      %s117 = ssub.s32 %s9, 1
      // Predicated region
      $region13: #{gconv2d_forward.1} parent=11 // pred_check
        %p118 = pneg %p30
      $region14: #{gconv2d_forward.1} parent=11 // pred_check_branch
        %120 = sbr.rel (%p118) target = $region16
      $region15: #{gconv2d_forward.1} parent=11 // pred_region
        _
      $region16: #{gconv2d_forward.1} parent=11 // pred_fallthru
        _
      // Predicated region
      $region17: #{gconv2d_forward.1} parent=11 // pred_check
        %p121 = pneg %p77
      $region18: #{gconv2d_forward.1} parent=11 // pred_check_branch
        %123 = sbr.rel (%p121) target = $region20
      $region19: #{gconv2d_forward.1} parent=11 // pred_region
        _
      $region20: #{gconv2d_forward.1} parent=11 // pred_fallthru
        _
    $region12: #{gconv2d_forward.1} parent=5 // pred_fallthru
      _
    %p124 = scmp.lt.s32.totalorder %s9, 2
    // Predicated region
    $region21: #{gconv2d_forward.1} parent=5 // pred_check
      %p125 = pneg %p124
    $region22: #{gconv2d_forward.1} parent=5 // pred_check_branch
      %127 = sbr.rel (%p125) target = $region24
    $region23: #{gconv2d_forward.1} parent=5 // pred_region
      // Predicated region
      $region25: #{gconv2d_forward.1} parent=23 // pred_check
        %p128 = pneg %p50
      $region26: #{gconv2d_forward.1} parent=23 // pred_check_branch
        %130 = sbr.rel (%p128) target = $region28
      $region27: #{gconv2d_forward.1} parent=23 // pred_region
        %p131 = scmp.lt.s32.totalorder %s9, 1
        %s132 = scalar_select %p131, %s9, 1
        %s133 = smul.addr %s132, 3
        %s134 = smul.addr %s133, 4
        %s135 = scalar_lea.vmem %s1, %s134
      $region28: #{gconv2d_forward.1} parent=23 // pred_fallthru
        _
    $region24: #{gconv2d_forward.1} parent=5 // pred_fallthru
      _
    %p136 = scmp.le.s32.totalorder 1, %s9
    %p137 = scmp.lt.s32.totalorder %s9, 3
    %p138 = pnand %p136, %p137
    %p139 = pneg %p138
    // Predicated region
    $region29: #{gconv2d_forward.1} parent=5 // pred_check
      _
    $region30: #{gconv2d_forward.1} parent=5 // pred_check_branch
      %141 = sbr.rel (%p138) target = $region32
    $region31: #{gconv2d_forward.1} parent=5 // pred_region
      %s142 = ssub.s32 %s9, 1
      %p143 = pneg %p30
      %p144 = pneg %p27
      %p145 = scmp.lt.s32.totalorder %s14, 1
      %s146 = scalar_select %p145, %s14, 1
      %s147 = smul.addr %s146, 3
      %s148 = smul.addr %s147, 4
      %s149 = scalar_lea.vmem %s1, %s148
      %p150 = pneg %p56
      %p151 = pneg %p53
      %p152 = pneg %p77
      %p153 = pneg %p74
      %p154 = pneg %p103
      %p155 = pneg %p100
      %p156 = scmp.lt.s32.totalorder %s14, 1
      %s157 = scalar_select %p156, %s14, 1
      %s158 = smul.addr %s157, 2
      %s159 = smul.addr %s158, 8
      %s160 = scalar_lea.vmem %s3, %s159
      %p161 = scmp.lt.s32.totalorder %s14, 1
      %s162 = scalar_select %p161, %s14, 1
      %s163 = smul.addr %s162, 3
      %s164 = smul.addr %s163, 4
      %s165 = scalar_lea.vmem %s1, %s164
      %p166 = scmp.lt.s32.totalorder %s14, 1
      %s167 = scalar_select %p166, %s14, 1
      %s168 = smul.addr %s167, 2
      %s169 = smul.addr %s168, 8
      %s170 = scalar_lea.vmem %s3, %s169
      %v172 = vld [vmem:[%s0] sm:$0xf]
      %v173 = vld [vmem:[%s165] sm:$0xff]
      %s174 = scalar_lea.vmem %s0, 4
      %v175 = vld [vmem:[%s174] sm:$0xf]
      %v177 = vunpack.c.l.b16 %v173
      %v178 = vunpack.c.h.b16 %v173
      %v179 = vpack.c.b16 %v177, %v177
      %v180 = vpack.c.b16 %v178, %v178
      %181 = vrot.lane.b32.xlu0 %v179, 127
      %v182 = vpop.permute.xlu0 %181
      %183 = vrot.lane.b32.xlu0 %v180, 127
      %v184 = vpop.permute.xlu0 %183
      %vm185 = vcmask 1039360
      %v186 = vsel %vm185, %v182, %v184
      %vm187 = vcmask 64512
      %v189 = vsel %vm187, %v175, 0
      %vm191 = vcmask 1043456
      %v193 = vsel %vm191, %v186, 0
      %v196 = vsel %vm191, %v184, 0
      %198 = vmatprep.subr.bf16.mxu0 0
      %199 = vmatpush1.bf16.msra.mxu0 0
      %200 = vmatprep.subr.bf16.mxu0 0
      %201 = vmatpush1.bf16.msra.mxu0 0
      %202 = vmatprep.subr.bf16.mxu0 0
      %203 = vmatpush1.bf16.msra.mxu0 0
      %204 = vmatprep.subr.bf16.mxu0 0
      %205 = vmatpush1.bf16.msra.mxu0 0
      %206 = vmatprep.subr.bf16.mxu0 0
      %207 = vmatpush1.bf16.msra.mxu0 0
      %208 = vmatprep.subr.bf16.mxu0 0
      %209 = vmatpush1.bf16.msra.mxu0 0
      %210 = vmatprep.subr.bf16.mxu0 0
      %211 = vmatpush1.bf16.msra.mxu0 0
      %212 = vmatprep.subr.bf16.mxu0 %v196
      %213 = vmatpush1.bf16.msra.mxu0 %v193
      %214 = vmatprep.subr.bf16.mxu0 0
      %215 = vmatpush2.bf16.msra.mxu0 0
      %216 = vmatprep.subr.bf16.mxu0 0
      %217 = vmatpush2.bf16.msra.mxu0 0
      %218 = vmatprep.subr.bf16.mxu0 0
      %219 = vmatpush2.bf16.msra.mxu0 0
      %220 = vmatprep.subr.bf16.mxu0 0
      %221 = vmatpush2.bf16.msra.mxu0 0
      %222 = vmatprep.subr.bf16.mxu0 0
      %223 = vmatpush2.bf16.msra.mxu0 0
      %224 = vmatprep.subr.bf16.mxu0 0
      %225 = vmatpush2.bf16.msra.mxu0 0
      %226 = vmatprep.subr.bf16.mxu0 0
      %227 = vmatpush2.bf16.msra.mxu0 0
      %228 = vmatprep.subr.bf16.mxu0 0
      %229 = vmatpush2.bf16.msra.mxu0 0
      %230 = vmatprep.mubr.bf16.mxu0 0
      %231 = vmatmul.mubr.bf16.gmra.mxu0 %v189
      %v232 = vpop.f32.mrf.mxu0
      %v233 = vadd.f32 0.0, %v232
      %v234 = vpop.f32.mrf.mxu0
      %v235 = vadd.f32 0.0, %v234
      %v236 = vpop.f32.mrf.mxu0
      %v237 = vpop.f32.mrf.mxu0
      %238 = vdwg.mxu0
      %v240 = vsel %vm187, %v172, 0
      %v243 = vsel %vm191, %v179, 0
      %v246 = vsel %vm191, %v180, 0
      %248 = vmatprep.subr.bf16.mxu0 0
      %249 = vmatpush1.bf16.msra.mxu0 0
      %250 = vmatprep.subr.bf16.mxu0 0
      %251 = vmatpush1.bf16.msra.mxu0 0
      %252 = vmatprep.subr.bf16.mxu0 0
      %253 = vmatpush1.bf16.msra.mxu0 0
      %254 = vmatprep.subr.bf16.mxu0 0
      %255 = vmatpush1.bf16.msra.mxu0 0
      %256 = vmatprep.subr.bf16.mxu0 0
      %257 = vmatpush1.bf16.msra.mxu0 0
      %258 = vmatprep.subr.bf16.mxu0 0
      %259 = vmatpush1.bf16.msra.mxu0 0
      %260 = vmatprep.subr.bf16.mxu0 0
      %261 = vmatpush1.bf16.msra.mxu0 0
      %262 = vmatprep.subr.bf16.mxu0 %v246
      %263 = vmatpush1.bf16.msra.mxu0 %v243
      %264 = vmatprep.subr.bf16.mxu0 0
      %265 = vmatpush2.bf16.msra.mxu0 0
      %266 = vmatprep.subr.bf16.mxu0 0
      %267 = vmatpush2.bf16.msra.mxu0 0
      %268 = vmatprep.subr.bf16.mxu0 0
      %269 = vmatpush2.bf16.msra.mxu0 0
      %270 = vmatprep.subr.bf16.mxu0 0
      %271 = vmatpush2.bf16.msra.mxu0 0
      %272 = vmatprep.subr.bf16.mxu0 0
      %273 = vmatpush2.bf16.msra.mxu0 0
      %274 = vmatprep.subr.bf16.mxu0 0
      %275 = vmatpush2.bf16.msra.mxu0 0
      %276 = vmatprep.subr.bf16.mxu0 0
      %277 = vmatpush2.bf16.msra.mxu0 0
      %278 = vmatprep.subr.bf16.mxu0 0
      %279 = vmatpush2.bf16.msra.mxu0 0
      %280 = vmatprep.mubr.bf16.mxu0 0
      %281 = vmatmul.mubr.bf16.gmra.mxu0 %v240
      %v282 = vpop.f32.mrf.mxu0
      %v283 = vadd.f32 %v233, %v282
      %v284 = vpop.f32.mrf.mxu0
      %v285 = vadd.f32 %v235, %v284
      %v286 = vpop.f32.mrf.mxu0
      %v287 = vpop.f32.mrf.mxu0
      %288 = vdwg.mxu0
      %s289 = scalar_lea.vmem %s0, 8
      %v290 = vld [vmem:[%s289] sm:$0xf]
      %291 = vrot.lane.b32.xlu0 %v179, 126
      %v292 = vpop.permute.xlu0 %291
      %293 = vrot.lane.b32.xlu0 %v180, 126
      %v294 = vpop.permute.xlu0 %293
      %vm295 = vcmask 1031168
      %v296 = vsel %vm295, %v292, %v294
      %v298 = vsel %vm187, %v290, 0
      %v301 = vsel %vm191, %v296, 0
      %v304 = vsel %vm191, %v294, 0
      %306 = vmatprep.subr.bf16.mxu0 0
      %307 = vmatpush1.bf16.msra.mxu0 0
      %308 = vmatprep.subr.bf16.mxu0 0
      %309 = vmatpush1.bf16.msra.mxu0 0
      %310 = vmatprep.subr.bf16.mxu0 0
      %311 = vmatpush1.bf16.msra.mxu0 0
      %312 = vmatprep.subr.bf16.mxu0 0
      %313 = vmatpush1.bf16.msra.mxu0 0
      %314 = vmatprep.subr.bf16.mxu0 0
      %315 = vmatpush1.bf16.msra.mxu0 0
      %316 = vmatprep.subr.bf16.mxu0 0
      %317 = vmatpush1.bf16.msra.mxu0 0
      %318 = vmatprep.subr.bf16.mxu0 0
      %319 = vmatpush1.bf16.msra.mxu0 0
      %320 = vmatprep.subr.bf16.mxu0 %v304
      %321 = vmatpush1.bf16.msra.mxu0 %v301
      %322 = vmatprep.subr.bf16.mxu0 0
      %323 = vmatpush2.bf16.msra.mxu0 0
      %324 = vmatprep.subr.bf16.mxu0 0
      %325 = vmatpush2.bf16.msra.mxu0 0
      %326 = vmatprep.subr.bf16.mxu0 0
      %327 = vmatpush2.bf16.msra.mxu0 0
      %328 = vmatprep.subr.bf16.mxu0 0
      %329 = vmatpush2.bf16.msra.mxu0 0
      %330 = vmatprep.subr.bf16.mxu0 0
      %331 = vmatpush2.bf16.msra.mxu0 0
      %332 = vmatprep.subr.bf16.mxu0 0
      %333 = vmatpush2.bf16.msra.mxu0 0
      %334 = vmatprep.subr.bf16.mxu0 0
      %335 = vmatpush2.bf16.msra.mxu0 0
      %336 = vmatprep.subr.bf16.mxu0 0
      %337 = vmatpush2.bf16.msra.mxu0 0
      %338 = vmatprep.mubr.bf16.mxu0 0
      %339 = vmatmul.mubr.bf16.gmra.mxu0 %v298
      %v340 = vpop.f32.mrf.mxu0
      %v341 = vadd.f32 0.0, %v340
      %v342 = vpop.f32.mrf.mxu0
      %v343 = vadd.f32 0.0, %v342
      %v344 = vpop.f32.mrf.mxu0
      %v345 = vpop.f32.mrf.mxu0
      %346 = vdwg.mxu0
      %v347 = vadd.f32 %v283, %v341
      %v348 = vadd.f32 %v285, %v343
      %s349 = scalar_lea.vmem %s0, 12
      %v350 = vld [vmem:[%s349] sm:$0xf]
      %351 = vrot.lane.b32.xlu0 %v179, 112
      %v352 = vpop.permute.xlu0 %351
      %353 = vrot.lane.b32.xlu0 %v180, 112
      %v354 = vpop.permute.xlu0 %353
      %vm355 = vcmask 916480
      %v356 = vsel %vm355, %v352, %v354
      %v358 = vsel %vm187, %v350, 0
      %v361 = vsel %vm191, %v356, 0
      %v364 = vsel %vm191, %v354, 0
      %366 = vmatprep.subr.bf16.mxu0 0
      %367 = vmatpush1.bf16.msra.mxu0 0
      %368 = vmatprep.subr.bf16.mxu0 0
      %369 = vmatpush1.bf16.msra.mxu0 0
      %370 = vmatprep.subr.bf16.mxu0 0
      %371 = vmatpush1.bf16.msra.mxu0 0
      %372 = vmatprep.subr.bf16.mxu0 0
      %373 = vmatpush1.bf16.msra.mxu0 0
      %374 = vmatprep.subr.bf16.mxu0 0
      %375 = vmatpush1.bf16.msra.mxu0 0
      %376 = vmatprep.subr.bf16.mxu0 0
      %377 = vmatpush1.bf16.msra.mxu0 0
      %378 = vmatprep.subr.bf16.mxu0 0
      %379 = vmatpush1.bf16.msra.mxu0 0
      %380 = vmatprep.subr.bf16.mxu0 %v364
      %381 = vmatpush1.bf16.msra.mxu0 %v361
      %382 = vmatprep.subr.bf16.mxu0 0
      %383 = vmatpush2.bf16.msra.mxu0 0
      %384 = vmatprep.subr.bf16.mxu0 0
      %385 = vmatpush2.bf16.msra.mxu0 0
      %386 = vmatprep.subr.bf16.mxu0 0
      %387 = vmatpush2.bf16.msra.mxu0 0
      %388 = vmatprep.subr.bf16.mxu0 0
      %389 = vmatpush2.bf16.msra.mxu0 0
      %390 = vmatprep.subr.bf16.mxu0 0
      %391 = vmatpush2.bf16.msra.mxu0 0
      %392 = vmatprep.subr.bf16.mxu0 0
      %393 = vmatpush2.bf16.msra.mxu0 0
      %394 = vmatprep.subr.bf16.mxu0 0
      %395 = vmatpush2.bf16.msra.mxu0 0
      %396 = vmatprep.subr.bf16.mxu0 0
      %397 = vmatpush2.bf16.msra.mxu0 0
      %398 = vmatprep.mubr.bf16.mxu0 0
      %399 = vmatmul.mubr.bf16.gmra.mxu0 %v358
      %v400 = vpop.f32.mrf.mxu0
      %v401 = vadd.f32 0.0, %v400
      %v402 = vpop.f32.mrf.mxu0
      %v403 = vadd.f32 0.0, %v402
      %v404 = vpop.f32.mrf.mxu0
      %v405 = vpop.f32.mrf.mxu0
      %406 = vdwg.mxu0
      %v407 = vadd.f32 %v347, %v401
      %v408 = vadd.f32 %v348, %v403
      %s409 = scalar_lea.vmem %s0, 16
      %v410 = vld [vmem:[%s409] sm:$0xf]
      %411 = vrot.lane.b32.xlu0 %v179, 111
      %v412 = vpop.permute.xlu0 %411
      %413 = vrot.lane.b32.xlu0 %v180, 111
      %v414 = vpop.permute.xlu0 %413
      %vm415 = vcmask 908288
      %v416 = vsel %vm415, %v412, %v414
      %v418 = vsel %vm187, %v410, 0
      %v421 = vsel %vm191, %v416, 0
      %v424 = vsel %vm191, %v414, 0
      %426 = vmatprep.subr.bf16.mxu0 0
      %427 = vmatpush1.bf16.msra.mxu0 0
      %428 = vmatprep.subr.bf16.mxu0 0
      %429 = vmatpush1.bf16.msra.mxu0 0
      %430 = vmatprep.subr.bf16.mxu0 0
      %431 = vmatpush1.bf16.msra.mxu0 0
      %432 = vmatprep.subr.bf16.mxu0 0
      %433 = vmatpush1.bf16.msra.mxu0 0
      %434 = vmatprep.subr.bf16.mxu0 0
      %435 = vmatpush1.bf16.msra.mxu0 0
      %436 = vmatprep.subr.bf16.mxu0 0
      %437 = vmatpush1.bf16.msra.mxu0 0
      %438 = vmatprep.subr.bf16.mxu0 0
      %439 = vmatpush1.bf16.msra.mxu0 0
      %440 = vmatprep.subr.bf16.mxu0 %v424
      %441 = vmatpush1.bf16.msra.mxu0 %v421
      %442 = vmatprep.subr.bf16.mxu0 0
      %443 = vmatpush2.bf16.msra.mxu0 0
      %444 = vmatprep.subr.bf16.mxu0 0
      %445 = vmatpush2.bf16.msra.mxu0 0
      %446 = vmatprep.subr.bf16.mxu0 0
      %447 = vmatpush2.bf16.msra.mxu0 0
      %448 = vmatprep.subr.bf16.mxu0 0
      %449 = vmatpush2.bf16.msra.mxu0 0
      %450 = vmatprep.subr.bf16.mxu0 0
      %451 = vmatpush2.bf16.msra.mxu0 0
      %452 = vmatprep.subr.bf16.mxu0 0
      %453 = vmatpush2.bf16.msra.mxu0 0
      %454 = vmatprep.subr.bf16.mxu0 0
      %455 = vmatpush2.bf16.msra.mxu0 0
      %456 = vmatprep.subr.bf16.mxu0 0
      %457 = vmatpush2.bf16.msra.mxu0 0
      %458 = vmatprep.mubr.bf16.mxu0 0
      %459 = vmatmul.mubr.bf16.gmra.mxu0 %v418
      %v460 = vpop.f32.mrf.mxu0
      %v461 = vadd.f32 0.0, %v460
      %v462 = vpop.f32.mrf.mxu0
      %v463 = vadd.f32 0.0, %v462
      %v464 = vpop.f32.mrf.mxu0
      %v465 = vpop.f32.mrf.mxu0
      %466 = vdwg.mxu0
      %v467 = vadd.f32 %v407, %v461
      %v468 = vadd.f32 %v408, %v463
      %s469 = scalar_lea.vmem %s0, 20
      %v470 = vld [vmem:[%s469] sm:$0xf]
      %471 = vrot.lane.b32.xlu0 %v179, 110
      %v472 = vpop.permute.xlu0 %471
      %473 = vrot.lane.b32.xlu0 %v180, 110
      %v474 = vpop.permute.xlu0 %473
      %vm475 = vcmask 900096
      %v476 = vsel %vm475, %v472, %v474
      %v478 = vsel %vm187, %v470, 0
      %v481 = vsel %vm191, %v476, 0
      %v484 = vsel %vm191, %v474, 0
      %486 = vmatprep.subr.bf16.mxu0 0
      %487 = vmatpush1.bf16.msra.mxu0 0
      %488 = vmatprep.subr.bf16.mxu0 0
      %489 = vmatpush1.bf16.msra.mxu0 0
      %490 = vmatprep.subr.bf16.mxu0 0
      %491 = vmatpush1.bf16.msra.mxu0 0
      %492 = vmatprep.subr.bf16.mxu0 0
      %493 = vmatpush1.bf16.msra.mxu0 0
      %494 = vmatprep.subr.bf16.mxu0 0
      %495 = vmatpush1.bf16.msra.mxu0 0
      %496 = vmatprep.subr.bf16.mxu0 0
      %497 = vmatpush1.bf16.msra.mxu0 0
      %498 = vmatprep.subr.bf16.mxu0 0
      %499 = vmatpush1.bf16.msra.mxu0 0
      %500 = vmatprep.subr.bf16.mxu0 %v484
      %501 = vmatpush1.bf16.msra.mxu0 %v481
      %502 = vmatprep.subr.bf16.mxu0 0
      %503 = vmatpush2.bf16.msra.mxu0 0
      %504 = vmatprep.subr.bf16.mxu0 0
      %505 = vmatpush2.bf16.msra.mxu0 0
      %506 = vmatprep.subr.bf16.mxu0 0
      %507 = vmatpush2.bf16.msra.mxu0 0
      %508 = vmatprep.subr.bf16.mxu0 0
      %509 = vmatpush2.bf16.msra.mxu0 0
      %510 = vmatprep.subr.bf16.mxu0 0
      %511 = vmatpush2.bf16.msra.mxu0 0
      %512 = vmatprep.subr.bf16.mxu0 0
      %513 = vmatpush2.bf16.msra.mxu0 0
      %514 = vmatprep.subr.bf16.mxu0 0
      %515 = vmatpush2.bf16.msra.mxu0 0
      %516 = vmatprep.subr.bf16.mxu0 0
      %517 = vmatpush2.bf16.msra.mxu0 0
      %518 = vmatprep.mubr.bf16.mxu0 0
      %519 = vmatmul.mubr.bf16.gmra.mxu0 %v478
      %v520 = vpop.f32.mrf.mxu0
      %v521 = vadd.f32 0.0, %v520
      %v522 = vpop.f32.mrf.mxu0
      %v523 = vadd.f32 0.0, %v522
      %v524 = vpop.f32.mrf.mxu0
      %v525 = vpop.f32.mrf.mxu0
      %526 = vdwg.mxu0
      %v527 = vadd.f32 %v467, %v521
      %v528 = vadd.f32 %v468, %v523
      %s529 = scalar_lea.vmem %s0, 24
      %v530 = vld [vmem:[%s529] sm:$0xf]
      %531 = vrot.lane.b32.xlu0 %v179, 96
      %v532 = vpop.permute.xlu0 %531
      %533 = vrot.lane.b32.xlu0 %v180, 96
      %v534 = vpop.permute.xlu0 %533
      %vm535 = vcmask 785408
      %v536 = vsel %vm535, %v532, %v534
      %v538 = vsel %vm187, %v530, 0
      %v541 = vsel %vm191, %v536, 0
      %v544 = vsel %vm191, %v534, 0
      %546 = vmatprep.subr.bf16.mxu0 0
      %547 = vmatpush1.bf16.msra.mxu0 0
      %548 = vmatprep.subr.bf16.mxu0 0
      %549 = vmatpush1.bf16.msra.mxu0 0
      %550 = vmatprep.subr.bf16.mxu0 0
      %551 = vmatpush1.bf16.msra.mxu0 0
      %552 = vmatprep.subr.bf16.mxu0 0
      %553 = vmatpush1.bf16.msra.mxu0 0
      %554 = vmatprep.subr.bf16.mxu0 0
      %555 = vmatpush1.bf16.msra.mxu0 0
      %556 = vmatprep.subr.bf16.mxu0 0
      %557 = vmatpush1.bf16.msra.mxu0 0
      %558 = vmatprep.subr.bf16.mxu0 0
      %559 = vmatpush1.bf16.msra.mxu0 0
      %560 = vmatprep.subr.bf16.mxu0 %v544
      %561 = vmatpush1.bf16.msra.mxu0 %v541
      %562 = vmatprep.subr.bf16.mxu0 0
      %563 = vmatpush2.bf16.msra.mxu0 0
      %564 = vmatprep.subr.bf16.mxu0 0
      %565 = vmatpush2.bf16.msra.mxu0 0
      %566 = vmatprep.subr.bf16.mxu0 0
      %567 = vmatpush2.bf16.msra.mxu0 0
      %568 = vmatprep.subr.bf16.mxu0 0
      %569 = vmatpush2.bf16.msra.mxu0 0
      %570 = vmatprep.subr.bf16.mxu0 0
      %571 = vmatpush2.bf16.msra.mxu0 0
      %572 = vmatprep.subr.bf16.mxu0 0
      %573 = vmatpush2.bf16.msra.mxu0 0
      %574 = vmatprep.subr.bf16.mxu0 0
      %575 = vmatpush2.bf16.msra.mxu0 0
      %576 = vmatprep.subr.bf16.mxu0 0
      %577 = vmatpush2.bf16.msra.mxu0 0
      %578 = vmatprep.mubr.bf16.mxu0 0
      %579 = vmatmul.mubr.bf16.gmra.mxu0 %v538
      %v580 = vpop.f32.mrf.mxu0
      %v581 = vadd.f32 0.0, %v580
      %v582 = vpop.f32.mrf.mxu0
      %v583 = vadd.f32 0.0, %v582
      %v584 = vpop.f32.mrf.mxu0
      %v585 = vpop.f32.mrf.mxu0
      %586 = vdwg.mxu0
      %v587 = vadd.f32 %v527, %v581
      %v588 = vadd.f32 %v528, %v583
      %s589 = scalar_lea.vmem %s0, 28
      %v590 = vld [vmem:[%s589] sm:$0xf]
      %v591 = vld [vmem:[%s165] sm:$0xff]
      %v592 = vld [vmem:[%s165 + $0x8] sm:$0xf]
      %v595 = vunpack.c.l.b16 %v591
      %v596 = vunpack.c.h.b16 %v591
      %v597 = vunpack.c.l.b16 %v592
      %v598 = vpack.c.b16 %v595, %v595
      %v599 = vpack.c.b16 %v596, %v596
      %v600 = vpack.c.b16 %v597, %v597
      %601 = vrot.lane.b32.xlu0 %v598, 95
      %v602 = vpop.permute.xlu0 %601
      %603 = vrot.lane.b32.xlu0 %v599, 95
      %v604 = vpop.permute.xlu0 %603
      %605 = vrot.lane.b32.xlu0 %v600, 95
      %v606 = vpop.permute.xlu0 %605
      %vm607 = vcmask 777216
      %v608 = vsel %vm607, %v602, %v604
      %v609 = vsel %vm607, %v604, %v606
      %v611 = vsel %vm187, %v590, 0
      %v614 = vsel %vm191, %v608, 0
      %v617 = vsel %vm191, %v609, 0
      %619 = vmatprep.subr.bf16.mxu0 0
      %620 = vmatpush1.bf16.msra.mxu0 0
      %621 = vmatprep.subr.bf16.mxu0 0
      %622 = vmatpush1.bf16.msra.mxu0 0
      %623 = vmatprep.subr.bf16.mxu0 0
      %624 = vmatpush1.bf16.msra.mxu0 0
      %625 = vmatprep.subr.bf16.mxu0 0
      %626 = vmatpush1.bf16.msra.mxu0 0
      %627 = vmatprep.subr.bf16.mxu0 0
      %628 = vmatpush1.bf16.msra.mxu0 0
      %629 = vmatprep.subr.bf16.mxu0 0
      %630 = vmatpush1.bf16.msra.mxu0 0
      %631 = vmatprep.subr.bf16.mxu0 0
      %632 = vmatpush1.bf16.msra.mxu0 0
      %633 = vmatprep.subr.bf16.mxu0 %v617
      %634 = vmatpush1.bf16.msra.mxu0 %v614
      %635 = vmatprep.subr.bf16.mxu0 0
      %636 = vmatpush2.bf16.msra.mxu0 0
      %637 = vmatprep.subr.bf16.mxu0 0
      %638 = vmatpush2.bf16.msra.mxu0 0
      %639 = vmatprep.subr.bf16.mxu0 0
      %640 = vmatpush2.bf16.msra.mxu0 0
      %641 = vmatprep.subr.bf16.mxu0 0
      %642 = vmatpush2.bf16.msra.mxu0 0
      %643 = vmatprep.subr.bf16.mxu0 0
      %644 = vmatpush2.bf16.msra.mxu0 0
      %645 = vmatprep.subr.bf16.mxu0 0
      %646 = vmatpush2.bf16.msra.mxu0 0
      %647 = vmatprep.subr.bf16.mxu0 0
      %648 = vmatpush2.bf16.msra.mxu0 0
      %649 = vmatprep.subr.bf16.mxu0 0
      %650 = vmatpush2.bf16.msra.mxu0 0
      %651 = vmatprep.mubr.bf16.mxu0 0
      %652 = vmatmul.mubr.bf16.gmra.mxu0 %v611
      %v653 = vpop.f32.mrf.mxu0
      %v654 = vadd.f32 0.0, %v653
      %v655 = vpop.f32.mrf.mxu0
      %v656 = vadd.f32 0.0, %v655
      %v657 = vpop.f32.mrf.mxu0
      %v658 = vpop.f32.mrf.mxu0
      %659 = vdwg.mxu0
      %v660 = vadd.f32 %v587, %v654
      %v661 = vadd.f32 %v588, %v656
      %s662 = scalar_lea.vmem %s0, 32
      %v663 = vld [vmem:[%s662] sm:$0xf]
      %664 = vrot.lane.b32.xlu0 %v598, 94
      %v665 = vpop.permute.xlu0 %664
      %666 = vrot.lane.b32.xlu0 %v599, 94
      %v667 = vpop.permute.xlu0 %666
      %668 = vrot.lane.b32.xlu0 %v600, 94
      %v669 = vpop.permute.xlu0 %668
      %vm670 = vcmask 769024
      %v671 = vsel %vm670, %v665, %v667
      %v672 = vsel %vm670, %v667, %v669
      %v674 = vsel %vm187, %v663, 0
      %v677 = vsel %vm191, %v671, 0
      %v680 = vsel %vm191, %v672, 0
      %682 = vmatprep.subr.bf16.mxu0 0
      %683 = vmatpush1.bf16.msra.mxu0 0
      %684 = vmatprep.subr.bf16.mxu0 0
      %685 = vmatpush1.bf16.msra.mxu0 0
      %686 = vmatprep.subr.bf16.mxu0 0
      %687 = vmatpush1.bf16.msra.mxu0 0
      %688 = vmatprep.subr.bf16.mxu0 0
      %689 = vmatpush1.bf16.msra.mxu0 0
      %690 = vmatprep.subr.bf16.mxu0 0
      %691 = vmatpush1.bf16.msra.mxu0 0
      %692 = vmatprep.subr.bf16.mxu0 0
      %693 = vmatpush1.bf16.msra.mxu0 0
      %694 = vmatprep.subr.bf16.mxu0 0
      %695 = vmatpush1.bf16.msra.mxu0 0
      %696 = vmatprep.subr.bf16.mxu0 %v680
      %697 = vmatpush1.bf16.msra.mxu0 %v677
      %698 = vmatprep.subr.bf16.mxu0 0
      %699 = vmatpush2.bf16.msra.mxu0 0
      %700 = vmatprep.subr.bf16.mxu0 0
      %701 = vmatpush2.bf16.msra.mxu0 0
      %702 = vmatprep.subr.bf16.mxu0 0
      %703 = vmatpush2.bf16.msra.mxu0 0
      %704 = vmatprep.subr.bf16.mxu0 0
      %705 = vmatpush2.bf16.msra.mxu0 0
      %706 = vmatprep.subr.bf16.mxu0 0
      %707 = vmatpush2.bf16.msra.mxu0 0
      %708 = vmatprep.subr.bf16.mxu0 0
      %709 = vmatpush2.bf16.msra.mxu0 0
      %710 = vmatprep.subr.bf16.mxu0 0
      %711 = vmatpush2.bf16.msra.mxu0 0
      %712 = vmatprep.subr.bf16.mxu0 0
      %713 = vmatpush2.bf16.msra.mxu0 0
      %714 = vmatprep.mubr.bf16.mxu0 0
      %715 = vmatmul.mubr.bf16.gmra.mxu0 %v674
      %v716 = vpop.f32.mrf.mxu0
      %v717 = vadd.f32 0.0, %v716
      %v718 = vpop.f32.mrf.mxu0
      %v719 = vadd.f32 0.0, %v718
      %v720 = vpop.f32.mrf.mxu0
      %v721 = vpop.f32.mrf.mxu0
      %722 = vdwg.mxu0
      %v723 = vadd.f32 %v660, %v717
      %v724 = vadd.f32 %v661, %v719
      %v725 = vld [vmem:[%s2] sm:$0xff]
      %727 = vset.pattern.permute.xlu0 0
      %728 = vperm.xlu0 %727, %v725
      %v729 = vpop.permute.xlu0 %728
      %v731 = vadd.f32 %v723, %v729
      %v732 = vadd.f32 %v724, %v729
      %733 = vst [vmem:[%s170] sm:$0xff] %v731
      %vm734 = vcmask 785408
      %735 = vst.msk [vmem:[%s170 + $0x8] sm:$0xff] %vm734, %v732
      %p736 = scmp.lt.s32.totalorder %s14, 1
      %s737 = scalar_select %p736, %s14, 1
      %s738 = smul.addr %s737, 2
      %s739 = smul.addr %s738, 8
      %s740 = scalar_lea.vmem %s3, %s739
      // Predicated region
      $region33: #{gconv2d_forward.1} parent=31 // pred_check
        %p741 = pneg %p100
      $region34: #{gconv2d_forward.1} parent=31 // pred_check_branch
        %743 = sbr.rel (%p741) target = $region36
      $region35: #{gconv2d_forward.1} parent=31 // pred_region
        _
      $region36: #{gconv2d_forward.1} parent=31 // pred_fallthru
        _
    $region32: #{gconv2d_forward.1} parent=5 // pred_fallthru
      _
    %p744 = scmp.le.s32.totalorder 2, %s9
    // Predicated region
    $region37: #{gconv2d_forward.1} parent=5 // pred_check
      %p745 = pneg %p744
    $region38: #{gconv2d_forward.1} parent=5 // pred_check_branch
      %747 = sbr.rel (%p745) target = $region40
    $region39: #{gconv2d_forward.1} parent=5 // pred_region
      %s748 = ssub.s32 %s9, 2
      // Predicated region
      $region41: #{gconv2d_forward.1} parent=39 // pred_check
        %p749 = pneg %p106
      $region42: #{gconv2d_forward.1} parent=39 // pred_check_branch
        %751 = sbr.rel (%p749) target = $region44
      $region43: #{gconv2d_forward.1} parent=39 // pred_region
        %p752 = scmp.lt.s32.totalorder %s15, 1
        %s753 = scalar_select %p752, %s15, 1
        %s754 = smul.addr %s753, 2
        %s755 = smul.addr %s754, 8
        %s756 = scalar_lea.vmem %s3, %s755
      $region44: #{gconv2d_forward.1} parent=39 // pred_fallthru
        _
    $region40: #{gconv2d_forward.1} parent=5 // pred_fallthru
      _
  $region6: #{gconv2d_forward.1} parent=0 // loop_footer
    %s13 = sadd.s32 1, %s9
  $region7: #{gconv2d_forward.1} parent=0 // loop_footer_branch
    %8 = sbr.rel target = $region3
  $region8: #{gconv2d_forward.1} parent=0 // loop_exit
    _

</llo_original>
